<compile_context>
chip_gen: v5e
topology: v5e:2x2
jax: 0.10.0
libtpu: 0.0.40
codegen_flags: <defaults>
</compile_context>

<pallas_src>
import functools

import jax
import jax.numpy as jnp
import numpy as np
from jax.experimental import pallas as pl
from jax.experimental.pallas import tpu as pltpu


def _simclr_kernel(t1_ref, t2_ref, w1_ref, b1_ref, w2_ref, b2_ref,
                   p1_ref, p2_ref, mask_ref):
    t1 = t1_ref[...]          # (tm, H) f32
    t2 = t2_ref[...]          # (tm, H) f32

    # ---- non-zero-row mask ------------------------------------------------
    # Plain lane-axis reductions in f32 (no full-tile transpose, no MXU use);
    # exact-zero rows stay exactly zero.  Emitted as a tiny (tm, 1) column.
    s1 = jnp.sum(jnp.abs(t1), axis=1, keepdims=True)        # (tm, 1) f32
    s2 = jnp.sum(jnp.abs(t2), axis=1, keepdims=True)        # (tm, 1) f32
    mask_ref[...] = jnp.logical_and(s1 > 0.0, s2 > 0.0).astype(jnp.int32)

    # ---- projection MLP, bf16 MXU / f32 accumulation ----------------------
    w1 = w1_ref[...]          # (H, P) bf16, resident in VMEM (single copy)
    b1 = b1_ref[...]          # (1, P) f32
    w2 = w2_ref[...]          # (P, P) bf16
    b2 = b2_ref[...]          # (1, P) f32

    def project(x, out_ref):
        h = jnp.dot(x.astype(jnp.bfloat16), w1,
                    preferred_element_type=jnp.float32) + b1   # f32
        h = jnp.maximum(h, 0.0)                                # ReLU in f32
        p = jnp.dot(h.astype(jnp.bfloat16), w2,
                    preferred_element_type=jnp.float32) + b2   # f32
        out_ref[...] = p.astype(out_ref.dtype)

    project(t1, p1_ref)       # two independent chains: no concat copy
    project(t2, p2_ref)


@functools.partial(jax.jit, static_argnames=("tm",))
def simclr_forward_pallas(t1_emb, t2_emb, w1, b1, w2, b2, *, tm=128):
    """t1_emb / t2_emb: [N, H] flattened per-column embeddings (f32).

    Returns (p1 [N,P] f32, p2 [N,P] f32, mask [N] bool).
    tm is the row tile (multiple of 8; at real TaBERT sizes sweep 256-1024,
    keeping the per-generation VMEM budget below in mind).
    """
    N, H = t1_emb.shape
    P = w1.shape[1]

    grid_n = pl.cdiv(N, tm)   # ragged final block handled by Pallas
                              # (OOB output writes are discarded)

    # One-time casts outside the kernel: bf16 weights (resident in VMEM),
    # f32 biases broadcast as (1, P) rows.
    w1_bf = w1.astype(jnp.bfloat16)
    w2_bf = w2.astype(jnp.bfloat16)
    b1_2d = b1.reshape(1, P).astype(jnp.float32)
    b2_2d = b2.reshape(1, P).astype(jnp.float32)

    row_spec = pl.BlockSpec((tm, H), lambda i: (i, 0))
    out_row_spec = pl.BlockSpec((tm, P), lambda i: (i, 0))
    mask_spec = pl.BlockSpec((tm, 1), lambda i: (i, 0))
    # Weights/biases: whole array resident in VMEM, no per-step double-buffer.
    weight_spec = pl.BlockSpec(memory_space=pltpu.MemorySpace.VMEM)

    # 2 tables x (x@W1, relu'd @W2) + the two mask reductions.
    flops = 4 * N * P * (H + P) + 4 * N * H
    bytes_accessed = (2 * N * H * 4            # f32 activations in
                      + 2 * N * P * 4          # f32 projections out
                      + N * 4                  # mask out
                      + (H * P + P * P) * 2    # bf16 weights
                      + 2 * P * 4)             # f32 biases

    # Explicit VMEM budget: double-buffered row tiles in/out + resident
    # weights + headroom for matmul temporaries.  Capped at 64 MiB (v7x
    # physical); v5e/v6e have 128 MiB so the cap is never the binding limit
    # at sane tm.
    vmem_bytes = (2 * 2 * tm * H * 4           # inputs, 2 bufs each
                  + 2 * 2 * tm * P * 4         # projection outputs, 2 bufs
                  + 2 * tm * 4                 # mask output
                  + (H * P + P * P) * 2        # resident bf16 weights
                  + 2 * P * 4)                 # biases
    vmem_limit = int(min(max(2 * vmem_bytes + (4 << 20), 32 << 20), 64 << 20))

    p1, p2, mask_col = pl.pallas_call(
        _simclr_kernel,
        out_shape=(
            jax.ShapeDtypeStruct((N, P), jnp.float32),
            jax.ShapeDtypeStruct((N, P), jnp.float32),
            jax.ShapeDtypeStruct((N, 1), jnp.int32),
        ),
        grid_spec=pltpu.PrefetchScalarGridSpec(
            num_scalar_prefetch=0,
            grid=(grid_n,),
            in_specs=[row_spec, row_spec,
                      weight_spec, weight_spec, weight_spec, weight_spec],
            out_specs=[out_row_spec, out_row_spec, mask_spec],
        ),
        compiler_params=pltpu.CompilerParams(
            dimension_semantics=("parallel",),
            vmem_limit_bytes=vmem_limit),
        cost_estimate=pl.CostEstimate(
            flops=flops, transcendentals=0, bytes_accessed=bytes_accessed),
    )(t1_emb, t2_emb, w1_bf, b1_2d, w2_bf, b2_2d)

    mask = mask_col[:, 0] > 0
    return p1, p2, mask


def simclr_forward_reference(t1_emb, t2_emb, w1, b1, w2, b2):
    def proj(x):
        h = jnp.maximum(x @ w1 + b1, 0.0)
        return h @ w2 + b2
    m = jnp.logical_and(jnp.sum(jnp.abs(t1_emb), axis=1) > 0,
                        jnp.sum(jnp.abs(t2_emb), axis=1) > 0)
    return proj(t1_emb), proj(t2_emb), m


if __name__ == "__main__":
    # Small, lane-dense, module-consistent shapes:
    # batch=4, columns=64, hidden=128, projection=128  ->  N = 256 rows,
    # grid = 2 steps of tm=128 (so both v7x TensorCores get work).
    # (Real TaBERT hidden_size=768 is likewise a multiple of 128.)
    B, C, H, P = 4, 64, 128, 128
    N = B * C

    key = jax.random.PRNGKey(0)
    k1, k2, k3, k4, k5, k6 = jax.random.split(key, 6)

    # Synthetic "encoder" outputs (stand-in for VerticalAttentionTableBert):
    # per-column embeddings with a few columns zeroed in each table so the
    # non-zero-column mask is non-trivial.
    t1_emb = jax.random.normal(k1, (B, C, H), dtype=jnp.float32)
    t2_emb = jax.random.normal(k2, (B, C, H), dtype=jnp.float32)
    t1_emb = t1_emb.at[0, 3].set(0.0).at[1, 5].set(0.0).at[2, 7].set(0.0)
    t2_emb = t2_emb.at[0, 3].set(0.0).at[1, 6].set(0.0).at[3, 9].set(0.0)

    # Deterministic projection parameters (nn.Linear(H,P), nn.Linear(P,P)),
    # stored as [in, out].
    w1 = jax.random.normal(k3, (H, P), dtype=jnp.float32) * 0.05
    b1 = jax.random.normal(k4, (P,), dtype=jnp.float32) * 0.05
    w2 = jax.random.normal(k5, (P, P), dtype=jnp.float32) * 0.05
    b2 = jax.random.normal(k6, (P,), dtype=jnp.float32) * 0.05

    t1_flat = t1_emb.reshape(N, H)
    t2_flat = t2_emb.reshape(N, H)

    p1, p2, mask = simclr_forward_pallas(t1_flat, t2_flat, w1, b1, w2, b2,
                                         tm=128)
    jax.block_until_ready((p1, p2, mask))

    # Verify against a plain-JAX f32 reference of the same forward.
    # The kernel's matmuls run in bf16 (f32 accumulation), so tolerances are
    # loosened accordingly; the mask is computed in f32 and must match exactly.
    r1, r2, rm = simclr_forward_reference(t1_flat, t2_flat, w1, b1, w2, b2)
    assert bool(jnp.array_equal(mask, rm)), "mask mismatch"
    np.testing.assert_allclose(np.asarray(p1), np.asarray(r1),
                               rtol=5e-2, atol=5e-2)
    np.testing.assert_allclose(np.asarray(p2), np.asarray(r2),
                               rtol=5e-2, atol=5e-2)

    # Module semantics: dynamic-shape boolean row compaction (emb[mask]) is
    # done once OUTSIDE the kernel / hot path (row-wise projection commutes
    # with row selection, so results are identical).  Note masked-out rows'
    # projections are NOT zero (relu(b1)@w2 + b2) - callers must filter by
    # mask, exactly as the PyTorch module does.
    mask_host = np.asarray(mask)
    t1_projection = np.asarray(p1)[mask_host]
    t2_projection = np.asarray(p2)[mask_host]
    assert t1_projection.shape == t2_projection.shape
    assert t1_projection.shape[0] == int(mask_host.sum())

    print("KERNEL_OK")
</pallas_src>

<mosaic_0001>
module attributes {stable_mosaic.version = 11 : i64} {
  func.func @_simclr_kernel(%arg0: i32, %arg1: memref<128x128xf32, #tpu.memory_space<vmem>>, %arg2: memref<128x128xf32, #tpu.memory_space<vmem>>, %arg3: memref<128x128xbf16, #tpu.memory_space<vmem>>, %arg4: memref<1x128xf32, #tpu.memory_space<vmem>>, %arg5: memref<128x128xbf16, #tpu.memory_space<vmem>>, %arg6: memref<1x128xf32, #tpu.memory_space<vmem>>, %arg7: memref<128x128xf32, #tpu.memory_space<vmem>>, %arg8: memref<128x128xf32, #tpu.memory_space<vmem>>, %arg9: memref<128x1xi32, #tpu.memory_space<vmem>>) attributes {dimension_semantics = [#tpu.dimension_semantics<parallel>], iteration_bounds = array<i64: 2>, scalar_prefetch = 0 : i64, scratch_operands = 0 : i64, tpu.core_type = #tpu.core_type<tc>, window_params = [{transform_indices = @transform_0, window_bounds = array<i64: 128, 128>}, {transform_indices = @transform_1, window_bounds = array<i64: 128, 128>}, {pipeline_mode = #tpu.pipeline_mode<synchronous>, transform_indices = @transform_2, window_bounds = array<i64: 128, 128>}, {pipeline_mode = #tpu.pipeline_mode<synchronous>, transform_indices = @transform_3, window_bounds = array<i64: 1, 128>}, {pipeline_mode = #tpu.pipeline_mode<synchronous>, transform_indices = @transform_4, window_bounds = array<i64: 128, 128>}, {pipeline_mode = #tpu.pipeline_mode<synchronous>, transform_indices = @transform_5, window_bounds = array<i64: 1, 128>}, {transform_indices = @transform_6, window_bounds = array<i64: 128, 128>}, {transform_indices = @transform_7, window_bounds = array<i64: 128, 128>}, {transform_indices = @transform_8, window_bounds = array<i64: 128, 1>}]} {
    %c0 = arith.constant 0 : index
    %c0_0 = arith.constant 0 : index
    %0 = vector.load %arg1[%c0, %c0_0] : memref<128x128xf32, #tpu.memory_space<vmem>>, vector<128x128xf32>
    %c0_1 = arith.constant 0 : index
    %c0_2 = arith.constant 0 : index
    %1 = vector.load %arg2[%c0_1, %c0_2] : memref<128x128xf32, #tpu.memory_space<vmem>>, vector<128x128xf32>
    %2 = math.absf %0 : vector<128x128xf32>
    %cst = arith.constant dense<0.000000e+00> : vector<128xf32>
    %3 = vector.multi_reduction <add>, %2, %cst [1] : vector<128x128xf32> to vector<128xf32>
    %4 = vector.shape_cast %3 : vector<128xf32> to vector<128x1xf32>
    %5 = math.absf %1 : vector<128x128xf32>
    %cst_3 = arith.constant dense<0.000000e+00> : vector<128xf32>
    %6 = vector.multi_reduction <add>, %5, %cst_3 [1] : vector<128x128xf32> to vector<128xf32>
    %7 = vector.shape_cast %6 : vector<128xf32> to vector<128x1xf32>
    %cst_4 = arith.constant 0.000000e+00 : f32
    %8 = vector.broadcast %cst_4 : f32 to vector<128x1xf32>
    %9 = arith.cmpf ogt, %4, %8 : vector<128x1xf32>
    %cst_5 = arith.constant 0.000000e+00 : f32
    %10 = vector.broadcast %cst_5 : f32 to vector<128x1xf32>
    %11 = arith.cmpf ogt, %7, %10 : vector<128x1xf32>
    %12 = arith.andi %9, %11 : vector<128x1xi1>
    %13 = arith.extui %12 : vector<128x1xi1> to vector<128x1xi32>
    %c0_6 = arith.constant 0 : index
    %c0_7 = arith.constant 0 : index
    %14 = vector.load %arg9[%c0_6, %c0_7] : memref<128x1xi32, #tpu.memory_space<vmem>>, vector<128x1xi32>
    tpu.vector_store %arg9[%c0_6, %c0_7], %13 {strides = array<i32>} : memref<128x1xi32, #tpu.memory_space<vmem>>, vector<128x1xi32>,
    %c0_8 = arith.constant 0 : index
    %c0_9 = arith.constant 0 : index
    %15 = vector.load %arg3[%c0_8, %c0_9] : memref<128x128xbf16, #tpu.memory_space<vmem>>, vector<128x128xbf16>
    %c0_10 = arith.constant 0 : index
    %c0_11 = arith.constant 0 : index
    %16 = vector.load %arg4[%c0_10, %c0_11] : memref<1x128xf32, #tpu.memory_space<vmem>>, vector<1x128xf32>
    %c0_12 = arith.constant 0 : index
    %c0_13 = arith.constant 0 : index
    %17 = vector.load %arg5[%c0_12, %c0_13] : memref<128x128xbf16, #tpu.memory_space<vmem>>, vector<128x128xbf16>
    %c0_14 = arith.constant 0 : index
    %c0_15 = arith.constant 0 : index
    %18 = vector.load %arg6[%c0_14, %c0_15] : memref<1x128xf32, #tpu.memory_space<vmem>>, vector<1x128xf32>
    %19 = arith.truncf %0 : vector<128x128xf32> to vector<128x128xbf16>
    %cst_16 = arith.constant dense<0.000000e+00> : vector<128x128xf32>
    %20 = tpu.matmul %19, %15, %cst_16 {dimension_numbers = #tpu.dot_dimension_numbers<[1], [0], [0], [1], [0, 0, 1, 1], [], []>} : vector<128x128xbf16>, vector<128x128xbf16>, vector<128x128xf32> -> vector<128x128xf32>
    %21 = vector.broadcast %16 : vector<1x128xf32> to vector<128x128xf32>
    %22 = arith.addf %20, %21 : vector<128x128xf32>
    %cst_17 = arith.constant 0.000000e+00 : f32
    %23 = vector.broadcast %cst_17 : f32 to vector<128x128xf32>
    %24 = arith.maximumf %22, %23 : vector<128x128xf32>
    %25 = arith.truncf %24 : vector<128x128xf32> to vector<128x128xbf16>
    %cst_18 = arith.constant dense<0.000000e+00> : vector<128x128xf32>
    %26 = tpu.matmul %25, %17, %cst_18 {dimension_numbers = #tpu.dot_dimension_numbers<[1], [0], [0], [1], [0, 0, 1, 1], [], []>} : vector<128x128xbf16>, vector<128x128xbf16>, vector<128x128xf32> -> vector<128x128xf32>
    %27 = vector.broadcast %18 : vector<1x128xf32> to vector<128x128xf32>
    %28 = arith.addf %26, %27 : vector<128x128xf32>
    %c0_19 = arith.constant 0 : index
    %c0_20 = arith.constant 0 : index
    %29 = vector.load %arg7[%c0_19, %c0_20] : memref<128x128xf32, #tpu.memory_space<vmem>>, vector<128x128xf32>
    tpu.vector_store %arg7[%c0_19, %c0_20], %28 {strides = array<i32>} : memref<128x128xf32, #tpu.memory_space<vmem>>, vector<128x128xf32>,
    %30 = arith.truncf %1 : vector<128x128xf32> to vector<128x128xbf16>
    %cst_21 = arith.constant dense<0.000000e+00> : vector<128x128xf32>
    %31 = tpu.matmul %30, %15, %cst_21 {dimension_numbers = #tpu.dot_dimension_numbers<[1], [0], [0], [1], [0, 0, 1, 1], [], []>} : vector<128x128xbf16>, vector<128x128xbf16>, vector<128x128xf32> -> vector<128x128xf32>
    %32 = vector.broadcast %16 : vector<1x128xf32> to vector<128x128xf32>
    %33 = arith.addf %31, %32 : vector<128x128xf32>
    %cst_22 = arith.constant 0.000000e+00 : f32
    %34 = vector.broadcast %cst_22 : f32 to vector<128x128xf32>
    %35 = arith.maximumf %33, %34 : vector<128x128xf32>
    %36 = arith.truncf %35 : vector<128x128xf32> to vector<128x128xbf16>
    %cst_23 = arith.constant dense<0.000000e+00> : vector<128x128xf32>
    %37 = tpu.matmul %36, %17, %cst_23 {dimension_numbers = #tpu.dot_dimension_numbers<[1], [0], [0], [1], [0, 0, 1, 1], [], []>} : vector<128x128xbf16>, vector<128x128xbf16>, vector<128x128xf32> -> vector<128x128xf32>
    %38 = vector.broadcast %18 : vector<1x128xf32> to vector<128x128xf32>
    %39 = arith.addf %37, %38 : vector<128x128xf32>
    %c0_24 = arith.constant 0 : index
    %c0_25 = arith.constant 0 : index
    %40 = vector.load %arg8[%c0_24, %c0_25] : memref<128x128xf32, #tpu.memory_space<vmem>>, vector<128x128xf32>
    tpu.vector_store %arg8[%c0_24, %c0_25], %39 {strides = array<i32>} : memref<128x128xf32, #tpu.memory_space<vmem>>, vector<128x128xf32>,
    return
  }
  func.func @transform_0(%arg0: i32) -> (i32, i32) {
    %c0_i32 = arith.constant 0 : i32
    %c0_i32_0 = arith.constant 0 : i32
    return %arg0, %c0_i32 : i32, i32
  }
  func.func @transform_1(%arg0: i32) -> (i32, i32) {
    %c0_i32 = arith.constant 0 : i32
    %c0_i32_0 = arith.constant 0 : i32
    return %arg0, %c0_i32 : i32, i32
  }
  func.func @transform_2(%arg0: i32) -> (i32, i32) {
    %c0_i32 = arith.constant 0 : i32
    %c0_i32_0 = arith.constant 0 : i32
    %c0_i32_1 = arith.constant 0 : i32
    return %c0_i32, %c0_i32_0 : i32, i32
  }
  func.func @transform_3(%arg0: i32) -> (i32, i32) {
    %c0_i32 = arith.constant 0 : i32
    %c0_i32_0 = arith.constant 0 : i32
    %c0_i32_1 = arith.constant 0 : i32
    return %c0_i32, %c0_i32_0 : i32, i32
  }
  func.func @transform_4(%arg0: i32) -> (i32, i32) {
    %c0_i32 = arith.constant 0 : i32
    %c0_i32_0 = arith.constant 0 : i32
    %c0_i32_1 = arith.constant 0 : i32
    return %c0_i32, %c0_i32_0 : i32, i32
  }
  func.func @transform_5(%arg0: i32) -> (i32, i32) {
    %c0_i32 = arith.constant 0 : i32
    %c0_i32_0 = arith.constant 0 : i32
    %c0_i32_1 = arith.constant 0 : i32
    return %c0_i32, %c0_i32_0 : i32, i32
  }
  func.func @transform_6(%arg0: i32) -> (i32, i32) {
    %c0_i32 = arith.constant 0 : i32
    %c0_i32_0 = arith.constant 0 : i32
    return %arg0, %c0_i32 : i32, i32
  }
  func.func @transform_7(%arg0: i32) -> (i32, i32) {
    %c0_i32 = arith.constant 0 : i32
    %c0_i32_0 = arith.constant 0 : i32
    return %arg0, %c0_i32 : i32, i32
  }
  func.func @transform_8(%arg0: i32) -> (i32, i32) {
    %c0_i32 = arith.constant 0 : i32
    %c0_i32_0 = arith.constant 0 : i32
    return %arg0, %c0_i32 : i32, i32
  }
}

</mosaic_0001>

<llo_original>
// kernel: simclr_forward_pallas.1
$region0: #{simclr_forward_pallas.1}
  #allocation0 [shape = 'u32[]', space=smem, size = 0x4, offset = 0x4, fixed_abs, tag = 'smem constant byte address 0x4 - core index']
  #allocation1 [shape = 'u32[72,128]{1,0:T(1,128)}', space=vmem, size = 0x9000, scoped, tag = 'internal scratch']
  %s0 = inlined_call_operand.vmem [shape: f32[256,128], index: 0, kind: input, shape index: {}]
  %s1 = inlined_call_operand.hbm [shape: f32[256,128], index: 1, kind: input, shape index: {}]
  %s2 = inlined_call_operand.vmem [shape: bf16[128,128], index: 2, kind: input, shape index: {}]
  %s3 = inlined_call_operand.vmem [shape: f32[1,128], index: 3, kind: input, shape index: {}]
  %s4 = inlined_call_operand.vmem [shape: bf16[128,128], index: 4, kind: input, shape index: {}]
  %s5 = inlined_call_operand.vmem [shape: f32[1,128], index: 5, kind: input, shape index: {}]
  %s6 = inlined_call_operand.hbm [shape: f32[256,128], index: 6, kind: output, shape index: {0}]
  %s7 = inlined_call_operand.hbm [shape: f32[256,128], index: 7, kind: output, shape index: {1}]
  %s8 = inlined_call_operand.vmem [shape: s32[256,1], index: 8, kind: output, shape index: {2}]
  %9 = xla_tuple %s6, %s7, %s8
  %s10 = sld [smem:[#allocation0]]
  $region77: #{simclr_forward_pallas.1} parent=0
    _
  %s12 = ssub.s32 1, %s10
  %s13 = scalar_select 0, %s12, %s10
  $region1: #{simclr_forward_pallas.1} parent=0
    #allocation2 [shape = 'u8[131072]{0}', space=vmem, size = 0x20000, scoped, tag = 'input window, operand 1']
    #allocation3 [shape = 's32[2]{0}', space=sflag, size = 0x8, scoped, tag = 'scoped memory for simclr_forward_pallas.1']
    #allocation4 [shape = 's32[2]{0}', space=sflag, size = 0x8, scoped, tag = 'scoped memory for simclr_forward_pallas.1']
    #allocation5 [shape = 'u8[131072]{0}', space=vmem, size = 0x20000, scoped, tag = 'output window, operand 0']
    #allocation6 [shape = 'u8[131072]{0}', space=vmem, size = 0x20000, scoped, tag = 'output window, operand 1']
    #allocation7 [shape = 's32[2]{0}', space=sflag, size = 0x8, scoped, tag = 'scoped memory for simclr_forward_pallas.1']
    %14 = vsyncpa [#allocation3], 0
    %s15 = scalar_lea.sflag [#allocation3], 1
    %16 = vsyncpa %s15, 0
    %17 = vsyncpa [#allocation4], 0
    %s18 = scalar_lea.sflag [#allocation4], 1
    %19 = vsyncpa %s18, 0
    %20 = vsyncpa [#allocation7], 0
    %s21 = scalar_lea.sflag [#allocation7], 1
    %22 = vsyncpa %s21, 0
    loop: start=0, step=1, limit=4
    $region2: #{simclr_forward_pallas.1} parent=1 // loop_pre_header
      _
    $region3: #{simclr_forward_pallas.1} parent=1 // loop_header
      %s24 = sphi 0, %s28
      %p25 = scmp.ge.s32.totalorder %s24, 4
      %s34 = sphi 0, %s36
      %s37 = sphi 0, %s34
      %s38 = sphi 0, %s37
      %s54 = sphi 0, %s38
      %s60 = sphi 0, %s62
      %s63 = sphi 0, %s60
      %s64 = sphi 0, %s63
      %s80 = sphi 0, %s64
      %s84 = sphi 0, %s84
      %s86 = sphi 0, %s84
      %s87 = sphi 0, %s86
      %s101 = sphi 0, %s87
      %s105 = sphi 0, %s105
      %s107 = sphi 0, %s105
      %s108 = sphi 0, %s107
      %s122 = sphi 0, %s108
      %s126 = sphi 0, %s126
      %s128 = sphi 0, %s126
      %s129 = sphi 0, %s128
      %s143 = sphi 0, %s129
      %s147 = sphi 0, %s147
      %s149 = sphi 0, %s147
      %s150 = sphi 0, %s149
      %s164 = sphi 0, %s150
      %s170 = sphi 0, %s172
      %s173 = sphi 0, %s170
      %s174 = sphi 0, %s173
      %s190 = sphi 0, %s174
      %s196 = sphi 0, %s198
      %s199 = sphi 0, %s196
      %s200 = sphi 0, %s199
      %s216 = sphi 0, %s200
      %s222 = sphi 0, %s224
      %s225 = sphi 0, %s222
      %s226 = sphi 0, %s225
      %s242 = sphi 0, %s226
    $region4: #{simclr_forward_pallas.1} parent=1 // loop_header_branch
      %27 = sbr.rel (%p25) target = $region8
    $region5: #{simclr_forward_pallas.1} parent=1 // loop_body
      %s29 = ssub.s32 %s24, 1
      %s30 = ssub.s32 %s24, 2
      %s31 = sadd.s32 %s24, 1
      %s32 = ssub.s32 %s24, %s31
      %p33 = scmp.eq.s32.totalorder %s32, 0
      %s35 = sadd.s32 %s34, 1
      %s36 = scalar_select %p33, %s34, %s35
      %p39 = pneg %p33
      %p40 = scmp.eq.s32.totalorder %s24, 1
      %p41 = por %p39, %p40
      %p42 = scmp.ne.s32.totalorder %s34, %s37
      %p43 = scmp.eq.s32.totalorder %s24, 0
      %p44 = por %p42, %p43
      %p45 = scmp.ne.s32.totalorder %s34, %s37
      %p46 = scmp.eq.s32.totalorder %s29, 1
      %p47 = por %p45, %p46
      %p48 = scmp.ne.s32.totalorder %s37, %s38
      %p49 = scmp.eq.s32.totalorder %s29, 0
      %p50 = por %p48, %p49
      %p51 = scmp.ne.s32.totalorder %s37, %s38
      %p52 = scmp.eq.s32.totalorder %s30, 1
      %p53 = por %p51, %p52
      %p55 = scmp.ne.s32.totalorder %s38, %s54
      %p56 = scmp.eq.s32.totalorder %s30, 0
      %p57 = por %p55, %p56
      %s58 = ssub.s32 %s24, %s31
      %p59 = scmp.eq.s32.totalorder %s58, 0
      %s61 = sadd.s32 %s60, 1
      %s62 = scalar_select %p59, %s60, %s61
      %p65 = pneg %p59
      %p66 = scmp.eq.s32.totalorder %s24, 1
      %p67 = por %p65, %p66
      %p68 = scmp.ne.s32.totalorder %s60, %s63
      %p69 = scmp.eq.s32.totalorder %s24, 0
      %p70 = por %p68, %p69
      %p71 = scmp.ne.s32.totalorder %s60, %s63
      %p72 = scmp.eq.s32.totalorder %s29, 1
      %p73 = por %p71, %p72
      %p74 = scmp.ne.s32.totalorder %s63, %s64
      %p75 = scmp.eq.s32.totalorder %s29, 0
      %p76 = por %p74, %p75
      %p77 = scmp.ne.s32.totalorder %s63, %s64
      %p78 = scmp.eq.s32.totalorder %s30, 1
      %p79 = por %p77, %p78
      %p81 = scmp.ne.s32.totalorder %s64, %s80
      %p82 = scmp.eq.s32.totalorder %s30, 0
      %p83 = por %p81, %p82
      %s85 = sadd.s32 %s84, 1
      %p88 = scmp.eq.s32.totalorder %s24, 1
      %p89 = scmp.ne.s32.totalorder %s84, %s86
      %p90 = scmp.eq.s32.totalorder %s24, 0
      %p91 = por %p89, %p90
      %p92 = scmp.ne.s32.totalorder %s84, %s86
      %p93 = scmp.eq.s32.totalorder %s29, 1
      %p94 = por %p92, %p93
      %p95 = scmp.ne.s32.totalorder %s86, %s87
      %p96 = scmp.eq.s32.totalorder %s29, 0
      %p97 = por %p95, %p96
      %p98 = scmp.ne.s32.totalorder %s86, %s87
      %p99 = scmp.eq.s32.totalorder %s30, 1
      %p100 = por %p98, %p99
      %p102 = scmp.ne.s32.totalorder %s87, %s101
      %p103 = scmp.eq.s32.totalorder %s30, 0
      %p104 = por %p102, %p103
      %s106 = sadd.s32 %s105, 1
      %p109 = scmp.eq.s32.totalorder %s24, 1
      %p110 = scmp.ne.s32.totalorder %s105, %s107
      %p111 = scmp.eq.s32.totalorder %s24, 0
      %p112 = por %p110, %p111
      %p113 = scmp.ne.s32.totalorder %s105, %s107
      %p114 = scmp.eq.s32.totalorder %s29, 1
      %p115 = por %p113, %p114
      %p116 = scmp.ne.s32.totalorder %s107, %s108
      %p117 = scmp.eq.s32.totalorder %s29, 0
      %p118 = por %p116, %p117
      %p119 = scmp.ne.s32.totalorder %s107, %s108
      %p120 = scmp.eq.s32.totalorder %s30, 1
      %p121 = por %p119, %p120
      %p123 = scmp.ne.s32.totalorder %s108, %s122
      %p124 = scmp.eq.s32.totalorder %s30, 0
      %p125 = por %p123, %p124
      %s127 = sadd.s32 %s126, 1
      %p130 = scmp.eq.s32.totalorder %s24, 1
      %p131 = scmp.ne.s32.totalorder %s126, %s128
      %p132 = scmp.eq.s32.totalorder %s24, 0
      %p133 = por %p131, %p132
      %p134 = scmp.ne.s32.totalorder %s126, %s128
      %p135 = scmp.eq.s32.totalorder %s29, 1
      %p136 = por %p134, %p135
      %p137 = scmp.ne.s32.totalorder %s128, %s129
      %p138 = scmp.eq.s32.totalorder %s29, 0
      %p139 = por %p137, %p138
      %p140 = scmp.ne.s32.totalorder %s128, %s129
      %p141 = scmp.eq.s32.totalorder %s30, 1
      %p142 = por %p140, %p141
      %p144 = scmp.ne.s32.totalorder %s129, %s143
      %p145 = scmp.eq.s32.totalorder %s30, 0
      %p146 = por %p144, %p145
      %s148 = sadd.s32 %s147, 1
      %p151 = scmp.eq.s32.totalorder %s24, 1
      %p152 = scmp.ne.s32.totalorder %s147, %s149
      %p153 = scmp.eq.s32.totalorder %s24, 0
      %p154 = por %p152, %p153
      %p155 = scmp.ne.s32.totalorder %s147, %s149
      %p156 = scmp.eq.s32.totalorder %s29, 1
      %p157 = por %p155, %p156
      %p158 = scmp.ne.s32.totalorder %s149, %s150
      %p159 = scmp.eq.s32.totalorder %s29, 0
      %p160 = por %p158, %p159
      %p161 = scmp.ne.s32.totalorder %s149, %s150
      %p162 = scmp.eq.s32.totalorder %s30, 1
      %p163 = por %p161, %p162
      %p165 = scmp.ne.s32.totalorder %s150, %s164
      %p166 = scmp.eq.s32.totalorder %s30, 0
      %p167 = por %p165, %p166
      %s168 = ssub.s32 %s24, %s31
      %p169 = scmp.eq.s32.totalorder %s168, 0
      %s171 = sadd.s32 %s170, 1
      %s172 = scalar_select %p169, %s170, %s171
      %p175 = pneg %p169
      %p176 = scmp.eq.s32.totalorder %s24, 1
      %p177 = por %p175, %p176
      %p178 = scmp.ne.s32.totalorder %s170, %s173
      %p179 = scmp.eq.s32.totalorder %s24, 0
      %p180 = por %p178, %p179
      %p181 = scmp.ne.s32.totalorder %s170, %s173
      %p182 = scmp.eq.s32.totalorder %s29, 1
      %p183 = por %p181, %p182
      %p184 = scmp.ne.s32.totalorder %s173, %s174
      %p185 = scmp.eq.s32.totalorder %s29, 0
      %p186 = por %p184, %p185
      %p187 = scmp.ne.s32.totalorder %s173, %s174
      %p188 = scmp.eq.s32.totalorder %s30, 1
      %p189 = por %p187, %p188
      %p191 = scmp.ne.s32.totalorder %s174, %s190
      %p192 = scmp.eq.s32.totalorder %s30, 0
      %p193 = por %p191, %p192
      %s194 = ssub.s32 %s24, %s31
      %p195 = scmp.eq.s32.totalorder %s194, 0
      %s197 = sadd.s32 %s196, 1
      %s198 = scalar_select %p195, %s196, %s197
      %p201 = pneg %p195
      %p202 = scmp.eq.s32.totalorder %s24, 1
      %p203 = por %p201, %p202
      %p204 = scmp.ne.s32.totalorder %s196, %s199
      %p205 = scmp.eq.s32.totalorder %s24, 0
      %p206 = por %p204, %p205
      %p207 = scmp.ne.s32.totalorder %s196, %s199
      %p208 = scmp.eq.s32.totalorder %s29, 1
      %p209 = por %p207, %p208
      %p210 = scmp.ne.s32.totalorder %s199, %s200
      %p211 = scmp.eq.s32.totalorder %s29, 0
      %p212 = por %p210, %p211
      %p213 = scmp.ne.s32.totalorder %s199, %s200
      %p214 = scmp.eq.s32.totalorder %s30, 1
      %p215 = por %p213, %p214
      %p217 = scmp.ne.s32.totalorder %s200, %s216
      %p218 = scmp.eq.s32.totalorder %s30, 0
      %p219 = por %p217, %p218
      %s220 = ssub.s32 %s24, %s31
      %p221 = scmp.eq.s32.totalorder %s220, 0
      %s223 = sadd.s32 %s222, 1
      %s224 = scalar_select %p221, %s222, %s223
      %p227 = pneg %p221
      %p228 = scmp.eq.s32.totalorder %s24, 1
      %p229 = por %p227, %p228
      %p230 = scmp.ne.s32.totalorder %s222, %s225
      %p231 = scmp.eq.s32.totalorder %s24, 0
      %p232 = por %p230, %p231
      %p233 = scmp.ne.s32.totalorder %s222, %s225
      %p234 = scmp.eq.s32.totalorder %s29, 1
      %p235 = por %p233, %p234
      %p236 = scmp.ne.s32.totalorder %s225, %s226
      %p237 = scmp.eq.s32.totalorder %s29, 0
      %p238 = por %p236, %p237
      %p239 = scmp.ne.s32.totalorder %s225, %s226
      %p240 = scmp.eq.s32.totalorder %s30, 1
      %p241 = por %p239, %p240
      %p243 = scmp.ne.s32.totalorder %s226, %s242
      %p244 = scmp.eq.s32.totalorder %s30, 0
      %p245 = por %p243, %p244
      %p246 = scmp.le.s32.totalorder 1, %s24
      %p247 = scmp.lt.s32.totalorder %s24, 3
      %p248 = pnand %p246, %p247
      %p249 = pneg %p248
      // Predicated region
      $region9: #{simclr_forward_pallas.1} parent=5 // pred_check
        _
      $region10: #{simclr_forward_pallas.1} parent=5 // pred_check_branch
        %251 = sbr.rel (%p248) target = $region12
      $region11: #{simclr_forward_pallas.1} parent=5 // pred_region
        %s252 = ssub.s32 %s24, 1
        // Predicated region
        $region13: #{simclr_forward_pallas.1} parent=11 // pred_check
          %p253 = pneg %p97
        $region14: #{simclr_forward_pallas.1} parent=11 // pred_check_branch
          %255 = sbr.rel (%p253) target = $region16
        $region15: #{simclr_forward_pallas.1} parent=11 // pred_region
          _
        $region16: #{simclr_forward_pallas.1} parent=11 // pred_fallthru
          _
        // Predicated region
        $region17: #{simclr_forward_pallas.1} parent=11 // pred_check
          %p256 = pneg %p118
        $region18: #{simclr_forward_pallas.1} parent=11 // pred_check_branch
          %258 = sbr.rel (%p256) target = $region20
        $region19: #{simclr_forward_pallas.1} parent=11 // pred_region
          _
        $region20: #{simclr_forward_pallas.1} parent=11 // pred_fallthru
          _
        // Predicated region
        $region21: #{simclr_forward_pallas.1} parent=11 // pred_check
          %p259 = pneg %p139
        $region22: #{simclr_forward_pallas.1} parent=11 // pred_check_branch
          %261 = sbr.rel (%p259) target = $region24
        $region23: #{simclr_forward_pallas.1} parent=11 // pred_region
          _
        $region24: #{simclr_forward_pallas.1} parent=11 // pred_fallthru
          _
        // Predicated region
        $region25: #{simclr_forward_pallas.1} parent=11 // pred_check
          %p262 = pneg %p160
        $region26: #{simclr_forward_pallas.1} parent=11 // pred_check_branch
          %264 = sbr.rel (%p262) target = $region28
        $region27: #{simclr_forward_pallas.1} parent=11 // pred_region
          _
        $region28: #{simclr_forward_pallas.1} parent=11 // pred_fallthru
          _
      $region12: #{simclr_forward_pallas.1} parent=5 // pred_fallthru
        _
      %p265 = scmp.lt.s32.totalorder %s24, 2
      // Predicated region
      $region29: #{simclr_forward_pallas.1} parent=5 // pred_check
        %p266 = pneg %p265
      $region30: #{simclr_forward_pallas.1} parent=5 // pred_check_branch
        %268 = sbr.rel (%p266) target = $region32
      $region31: #{simclr_forward_pallas.1} parent=5 // pred_region
        // Predicated region
        $region33: #{simclr_forward_pallas.1} parent=31 // pred_check
          %p269 = pneg %p44
        $region34: #{simclr_forward_pallas.1} parent=31 // pred_check_branch
          %271 = sbr.rel (%p269) target = $region36
        $region35: #{simclr_forward_pallas.1} parent=31 // pred_region
          %s272 = smul.u32 16, %s24
          %p273 = scmp.lt.s32.totalorder %s272, 31
          %s274 = scalar_select %p273, %s272, 31
          %s275 = smul.addr %s274, 8
          %s276 = scalar_lea.vmem %s0, %s275
          %s277 = smul.u32 16, %s24
        $region36: #{simclr_forward_pallas.1} parent=31 // pred_fallthru
          _
        // Predicated region
        $region37: #{simclr_forward_pallas.1} parent=31 // pred_check
          %p278 = pneg %p70
        $region38: #{simclr_forward_pallas.1} parent=31 // pred_check_branch
          %280 = sbr.rel (%p278) target = $region40
        $region39: #{simclr_forward_pallas.1} parent=31 // pred_region
          %s281 = sand.u32 %s60, 1
          %s282 = scalar_lea.sflag [#allocation3], %s281
          %s283 = sand.u32 %s60, 1
          %s284 = smul.addr %s283, 128
          %s285 = scalar_lea.vmem [#allocation2], %s284
          %s286 = smul.u32 16, %s24
          %288 = vsyncadd %s282, 0
          %s289 = smul.addr %s286, 8
          %s290 = scalar_lea.hbm %s1, %s289
          %s291 = sshll.u32 %s290, 4
          %s292 = int_to_ptr.hbm [resolvable:$true] %s291
          %s293 = sshll.u32 %s285, 4
          %s294 = int_to_ptr.vmem [resolvable:$true] %s293
          %299 = dma.hbm_to_vmem [thread:$0]  %s292, 2048, %s294, %s282, 128, 128, 8
        $region40: #{simclr_forward_pallas.1} parent=31 // pred_fallthru
          _
      $region32: #{simclr_forward_pallas.1} parent=5 // pred_fallthru
        _
      %p300 = scmp.le.s32.totalorder 1, %s24
      %p301 = scmp.lt.s32.totalorder %s24, 3
      %p302 = pnand %p300, %p301
      %p303 = pneg %p302
      // Predicated region
      $region41: #{simclr_forward_pallas.1} parent=5 // pred_check
        _
      $region42: #{simclr_forward_pallas.1} parent=5 // pred_check_branch
        %305 = sbr.rel (%p302) target = $region44
      $region43: #{simclr_forward_pallas.1} parent=5 // pred_region
        %s306 = ssub.s32 %s24, 1
        %s307 = sand.u32 %s63, 1
        %s308 = scalar_lea.sflag [#allocation3], %s307
        %s309 = sand.u32 %s63, 1
        %s310 = smul.addr %s309, 128
        %s311 = scalar_lea.vmem [#allocation2], %s310
        // Predicated region
        $region45: #{simclr_forward_pallas.1} parent=43 // pred_check
          %p312 = pneg %p76
        $region46: #{simclr_forward_pallas.1} parent=43 // pred_check_branch
          %314 = sbr.rel (%p312) target = $region48
        $region47: #{simclr_forward_pallas.1} parent=43 // pred_region
          %316 = dma.done %s308, 2048
        $region48: #{simclr_forward_pallas.1} parent=43 // pred_fallthru
          _
        %s317 = smul.u32 16, %s29
        %p318 = scmp.lt.s32.totalorder %s317, 31
        %s319 = scalar_select %p318, %s317, 31
        %s320 = smul.addr %s319, 8
        %s321 = scalar_lea.vmem %s0, %s320
        %p322 = pneg %p50
        %p323 = pneg %p47
        %s324 = sand.u32 %s63, 1
        %s325 = scalar_lea.sflag [#allocation3], %s324
        %s326 = sand.u32 %s63, 1
        %s327 = smul.addr %s326, 128
        %s328 = scalar_lea.vmem [#allocation2], %s327
        %p329 = pneg %p76
        %p330 = pneg %p73
        %p331 = pneg %p97
        %p332 = pneg %p94
        %p333 = pneg %p118
        %p334 = pneg %p115
        %p335 = pneg %p139
        %p336 = pneg %p136
        %p337 = pneg %p160
        %p338 = pneg %p157
        %p339 = pneg %p186
        %p340 = pneg %p183
        %s341 = sand.u32 %s173, 1
        %s342 = scalar_lea.sflag [#allocation4], %s341
        %s343 = sand.u32 %s173, 1
        %s344 = smul.addr %s343, 128
        %s345 = scalar_lea.vmem [#allocation5], %s344
        %p346 = pneg %p212
        %p347 = pneg %p209
        %s348 = sand.u32 %s199, 1
        %s349 = scalar_lea.sflag [#allocation7], %s348
        %s350 = sand.u32 %s199, 1
        %s351 = smul.addr %s350, 128
        %s352 = scalar_lea.vmem [#allocation6], %s351
        %p353 = pneg %p238
        %p354 = pneg %p235
        %s355 = smul.u32 16, %s29
        %p356 = scmp.lt.s32.totalorder %s355, 31
        %s357 = scalar_select %p356, %s355, 31
        %s358 = smul.addr %s357, 8
        %s359 = scalar_lea.vmem %s8, %s358
        %s360 = smul.u32 16, %s29
        %p361 = scmp.lt.s32.totalorder %s360, 31
        %s362 = scalar_select %p361, %s360, 31
        %s363 = smul.addr %s362, 8
        %s364 = scalar_lea.vmem %s0, %s363
        %s365 = smul.u32 16, %s29
        %s366 = smul.u32 16, %s29
        %s367 = smul.u32 16, %s29
        %s368 = smul.u32 16, %s29
        %s369 = smul.u32 16, %s29
        %p370 = scmp.lt.s32.totalorder %s369, 31
        %s371 = scalar_select %p370, %s369, 31
        %s372 = smul.addr %s371, 8
        %s373 = scalar_lea.vmem %s8, %s372
        %s374 = smul.u32 16, %s29
        %v375 = vld [vmem:[%s364] sm:$0xff]
        %v376 = vld [vmem:[%s364 + $0x8] sm:$0xff]
        %v377 = vld [vmem:[%s364 + $0x10] sm:$0xff]
        %v378 = vld [vmem:[%s364 + $0x18] sm:$0xff]
        %v379 = vld [vmem:[%s364 + $0x20] sm:$0xff]
        %v380 = vld [vmem:[%s364 + $0x28] sm:$0xff]
        %v381 = vld [vmem:[%s364 + $0x30] sm:$0xff]
        %v382 = vld [vmem:[%s364 + $0x38] sm:$0xff]
        %v383 = vld [vmem:[%s364 + $0x40] sm:$0xff]
        %v384 = vld [vmem:[%s364 + $0x48] sm:$0xff]
        %v385 = vld [vmem:[%s364 + $0x50] sm:$0xff]
        %v386 = vld [vmem:[%s364 + $0x58] sm:$0xff]
        %v387 = vld [vmem:[%s364 + $0x60] sm:$0xff]
        %v388 = vld [vmem:[%s364 + $0x68] sm:$0xff]
        %v389 = vld [vmem:[%s364 + $0x70] sm:$0xff]
        %v390 = vld [vmem:[%s364 + $0x78] sm:$0xff]
        %v391 = vld [vmem:[%s311] sm:$0xff]
        %v392 = vld [vmem:[%s311 + $0x8] sm:$0xff]
        %v393 = vld [vmem:[%s311 + $0x10] sm:$0xff]
        %v394 = vld [vmem:[%s311 + $0x18] sm:$0xff]
        %v395 = vld [vmem:[%s311 + $0x20] sm:$0xff]
        %v396 = vld [vmem:[%s311 + $0x28] sm:$0xff]
        %v397 = vld [vmem:[%s311 + $0x30] sm:$0xff]
        %v398 = vld [vmem:[%s311 + $0x38] sm:$0xff]
        %v399 = vld [vmem:[%s311 + $0x40] sm:$0xff]
        %v400 = vld [vmem:[%s311 + $0x48] sm:$0xff]
        %v401 = vld [vmem:[%s311 + $0x50] sm:$0xff]
        %v402 = vld [vmem:[%s311 + $0x58] sm:$0xff]
        %v403 = vld [vmem:[%s311 + $0x60] sm:$0xff]
        %v404 = vld [vmem:[%s311 + $0x68] sm:$0xff]
        %v405 = vld [vmem:[%s311 + $0x70] sm:$0xff]
        %v406 = vld [vmem:[%s311 + $0x78] sm:$0xff]
        %v407 = vand.u32 2147483647, %v375
        %v408 = vand.u32 2147483647, %v376
        %v409 = vand.u32 2147483647, %v377
        %v410 = vand.u32 2147483647, %v378
        %v411 = vand.u32 2147483647, %v379
        %v412 = vand.u32 2147483647, %v380
        %v413 = vand.u32 2147483647, %v381
        %v414 = vand.u32 2147483647, %v382
        %v415 = vand.u32 2147483647, %v383
        %v416 = vand.u32 2147483647, %v384
        %v417 = vand.u32 2147483647, %v385
        %v418 = vand.u32 2147483647, %v386
        %v419 = vand.u32 2147483647, %v387
        %v420 = vand.u32 2147483647, %v388
        %v421 = vand.u32 2147483647, %v389
        %v422 = vand.u32 2147483647, %v390
        %423 = vadd.xlane.f32.xlu0 %v407
        %v424 = vpop.xlane.xlu0 %423
        %425 = vadd.xlane.f32.xlu0 %v408
        %v426 = vpop.xlane.xlu0 %425
        %427 = vadd.xlane.f32.xlu0 %v409
        %v428 = vpop.xlane.xlu0 %427
        %429 = vadd.xlane.f32.xlu0 %v410
        %v430 = vpop.xlane.xlu0 %429
        %431 = vadd.xlane.f32.xlu0 %v411
        %v432 = vpop.xlane.xlu0 %431
        %433 = vadd.xlane.f32.xlu0 %v412
        %v434 = vpop.xlane.xlu0 %433
        %435 = vadd.xlane.f32.xlu0 %v413
        %v436 = vpop.xlane.xlu0 %435
        %437 = vadd.xlane.f32.xlu0 %v414
        %v438 = vpop.xlane.xlu0 %437
        %439 = vadd.xlane.f32.xlu0 %v415
        %v440 = vpop.xlane.xlu0 %439
        %441 = vadd.xlane.f32.xlu0 %v416
        %v442 = vpop.xlane.xlu0 %441
        %443 = vadd.xlane.f32.xlu0 %v417
        %v444 = vpop.xlane.xlu0 %443
        %445 = vadd.xlane.f32.xlu0 %v418
        %v446 = vpop.xlane.xlu0 %445
        %447 = vadd.xlane.f32.xlu0 %v419
        %v448 = vpop.xlane.xlu0 %447
        %449 = vadd.xlane.f32.xlu0 %v420
        %v450 = vpop.xlane.xlu0 %449
        %451 = vadd.xlane.f32.xlu0 %v421
        %v452 = vpop.xlane.xlu0 %451
        %453 = vadd.xlane.f32.xlu0 %v422
        %v454 = vpop.xlane.xlu0 %453
        %v455 = vand.u32 2147483647, %v391
        %v456 = vand.u32 2147483647, %v392
        %v457 = vand.u32 2147483647, %v393
        %v458 = vand.u32 2147483647, %v394
        %v459 = vand.u32 2147483647, %v395
        %v460 = vand.u32 2147483647, %v396
        %v461 = vand.u32 2147483647, %v397
        %v462 = vand.u32 2147483647, %v398
        %v463 = vand.u32 2147483647, %v399
        %v464 = vand.u32 2147483647, %v400
        %v465 = vand.u32 2147483647, %v401
        %v466 = vand.u32 2147483647, %v402
        %v467 = vand.u32 2147483647, %v403
        %v468 = vand.u32 2147483647, %v404
        %v469 = vand.u32 2147483647, %v405
        %v470 = vand.u32 2147483647, %v406
        %471 = vadd.xlane.f32.xlu0 %v455
        %v472 = vpop.xlane.xlu0 %471
        %473 = vadd.xlane.f32.xlu0 %v456
        %v474 = vpop.xlane.xlu0 %473
        %475 = vadd.xlane.f32.xlu0 %v457
        %v476 = vpop.xlane.xlu0 %475
        %477 = vadd.xlane.f32.xlu0 %v458
        %v478 = vpop.xlane.xlu0 %477
        %479 = vadd.xlane.f32.xlu0 %v459
        %v480 = vpop.xlane.xlu0 %479
        %481 = vadd.xlane.f32.xlu0 %v460
        %v482 = vpop.xlane.xlu0 %481
        %483 = vadd.xlane.f32.xlu0 %v461
        %v484 = vpop.xlane.xlu0 %483
        %485 = vadd.xlane.f32.xlu0 %v462
        %v486 = vpop.xlane.xlu0 %485
        %487 = vadd.xlane.f32.xlu0 %v463
        %v488 = vpop.xlane.xlu0 %487
        %489 = vadd.xlane.f32.xlu0 %v464
        %v490 = vpop.xlane.xlu0 %489
        %491 = vadd.xlane.f32.xlu0 %v465
        %v492 = vpop.xlane.xlu0 %491
        %493 = vadd.xlane.f32.xlu0 %v466
        %v494 = vpop.xlane.xlu0 %493
        %495 = vadd.xlane.f32.xlu0 %v467
        %v496 = vpop.xlane.xlu0 %495
        %497 = vadd.xlane.f32.xlu0 %v468
        %v498 = vpop.xlane.xlu0 %497
        %499 = vadd.xlane.f32.xlu0 %v469
        %v500 = vpop.xlane.xlu0 %499
        %501 = vadd.xlane.f32.xlu0 %v470
        %v502 = vpop.xlane.xlu0 %501
        %vm503 = vcmp.gt.f32.partialorder %v424, 0.0
        %vm504 = vcmp.gt.f32.partialorder %v426, 0.0
        %vm505 = vcmp.gt.f32.partialorder %v428, 0.0
        %vm506 = vcmp.gt.f32.partialorder %v430, 0.0
        %vm507 = vcmp.gt.f32.partialorder %v432, 0.0
        %vm508 = vcmp.gt.f32.partialorder %v434, 0.0
        %vm509 = vcmp.gt.f32.partialorder %v436, 0.0
        %vm510 = vcmp.gt.f32.partialorder %v438, 0.0
        %vm511 = vcmp.gt.f32.partialorder %v440, 0.0
        %vm512 = vcmp.gt.f32.partialorder %v442, 0.0
        %vm513 = vcmp.gt.f32.partialorder %v444, 0.0
        %vm514 = vcmp.gt.f32.partialorder %v446, 0.0
        %vm515 = vcmp.gt.f32.partialorder %v448, 0.0
        %vm516 = vcmp.gt.f32.partialorder %v450, 0.0
        %vm517 = vcmp.gt.f32.partialorder %v452, 0.0
        %vm518 = vcmp.gt.f32.partialorder %v454, 0.0
        %vm519 = vcmp.gt.f32.partialorder %v472, 0.0
        %vm520 = vcmp.gt.f32.partialorder %v474, 0.0
        %vm521 = vcmp.gt.f32.partialorder %v476, 0.0
        %vm522 = vcmp.gt.f32.partialorder %v478, 0.0
        %vm523 = vcmp.gt.f32.partialorder %v480, 0.0
        %vm524 = vcmp.gt.f32.partialorder %v482, 0.0
        %vm525 = vcmp.gt.f32.partialorder %v484, 0.0
        %vm526 = vcmp.gt.f32.partialorder %v486, 0.0
        %vm527 = vcmp.gt.f32.partialorder %v488, 0.0
        %vm528 = vcmp.gt.f32.partialorder %v490, 0.0
        %vm529 = vcmp.gt.f32.partialorder %v492, 0.0
        %vm530 = vcmp.gt.f32.partialorder %v494, 0.0
        %vm531 = vcmp.gt.f32.partialorder %v496, 0.0
        %vm532 = vcmp.gt.f32.partialorder %v498, 0.0
        %vm533 = vcmp.gt.f32.partialorder %v500, 0.0
        %vm534 = vcmp.gt.f32.partialorder %v502, 0.0
        %vm535 = vmand %vm503, %vm519
        %vm536 = vmand %vm504, %vm520
        %vm537 = vmand %vm505, %vm521
        %vm538 = vmand %vm506, %vm522
        %vm539 = vmand %vm507, %vm523
        %vm540 = vmand %vm508, %vm524
        %vm541 = vmand %vm509, %vm525
        %vm542 = vmand %vm510, %vm526
        %vm543 = vmand %vm511, %vm527
        %vm544 = vmand %vm512, %vm528
        %vm545 = vmand %vm513, %vm529
        %vm546 = vmand %vm514, %vm530
        %vm547 = vmand %vm515, %vm531
        %vm548 = vmand %vm516, %vm532
        %vm549 = vmand %vm517, %vm533
        %vm550 = vmand %vm518, %vm534
        %v551 = vsel %vm535, 1, 0
        %v552 = vsel %vm536, 1, 0
        %v553 = vsel %vm537, 1, 0
        %v554 = vsel %vm538, 1, 0
        %v555 = vsel %vm539, 1, 0
        %v556 = vsel %vm540, 1, 0
        %v557 = vsel %vm541, 1, 0
        %v558 = vsel %vm542, 1, 0
        %v559 = vsel %vm543, 1, 0
        %v560 = vsel %vm544, 1, 0
        %v561 = vsel %vm545, 1, 0
        %v562 = vsel %vm546, 1, 0
        %v563 = vsel %vm547, 1, 0
        %v564 = vsel %vm548, 1, 0
        %v565 = vsel %vm549, 1, 0
        %v566 = vsel %vm550, 1, 0
        %vm567 = vcmask 7168
        %568 = vst.msk [vmem:[%s373] sm:$0xff] %vm567, %v551
        %569 = vst.msk [vmem:[%s373 + $0x8] sm:$0xff] %vm567, %v552
        %570 = vst.msk [vmem:[%s373 + $0x10] sm:$0xff] %vm567, %v553
        %571 = vst.msk [vmem:[%s373 + $0x18] sm:$0xff] %vm567, %v554
        %572 = vst.msk [vmem:[%s373 + $0x20] sm:$0xff] %vm567, %v555
        %573 = vst.msk [vmem:[%s373 + $0x28] sm:$0xff] %vm567, %v556
        %574 = vst.msk [vmem:[%s373 + $0x30] sm:$0xff] %vm567, %v557
        %575 = vst.msk [vmem:[%s373 + $0x38] sm:$0xff] %vm567, %v558
        %576 = vst.msk [vmem:[%s373 + $0x40] sm:$0xff] %vm567, %v559
        %577 = vst.msk [vmem:[%s373 + $0x48] sm:$0xff] %vm567, %v560
        %578 = vst.msk [vmem:[%s373 + $0x50] sm:$0xff] %vm567, %v561
        %579 = vst.msk [vmem:[%s373 + $0x58] sm:$0xff] %vm567, %v562
        %580 = vst.msk [vmem:[%s373 + $0x60] sm:$0xff] %vm567, %v563
        %581 = vst.msk [vmem:[%s373 + $0x68] sm:$0xff] %vm567, %v564
        %582 = vst.msk [vmem:[%s373 + $0x70] sm:$0xff] %vm567, %v565
        %583 = vst.msk [vmem:[%s373 + $0x78] sm:$0xff] %vm567, %v566
        %v584 = vld [vmem:[%s2] sm:$0xf]
        %v585 = vld [vmem:[%s2 + $0x4] sm:$0xf]
        %v586 = vld [vmem:[%s2 + $0x8] sm:$0xf]
        %v587 = vld [vmem:[%s2 + $0xc] sm:$0xf]
        %v588 = vld [vmem:[%s2 + $0x10] sm:$0xf]
        %v589 = vld [vmem:[%s2 + $0x14] sm:$0xf]
        %v590 = vld [vmem:[%s2 + $0x18] sm:$0xf]
        %v591 = vld [vmem:[%s2 + $0x1c] sm:$0xf]
        %v592 = vld [vmem:[%s2 + $0x20] sm:$0xf]
        %v593 = vld [vmem:[%s2 + $0x24] sm:$0xf]
        %v594 = vld [vmem:[%s2 + $0x28] sm:$0xf]
        %v595 = vld [vmem:[%s2 + $0x2c] sm:$0xf]
        %v596 = vld [vmem:[%s2 + $0x30] sm:$0xf]
        %v597 = vld [vmem:[%s2 + $0x34] sm:$0xf]
        %v598 = vld [vmem:[%s2 + $0x38] sm:$0xf]
        %v599 = vld [vmem:[%s2 + $0x3c] sm:$0xf]
        %v600 = vld [vmem:[%s3] sm:$0x1]
        %v601 = vld [vmem:[%s4] sm:$0xf]
        %v602 = vld [vmem:[%s4 + $0x4] sm:$0xf]
        %v603 = vld [vmem:[%s4 + $0x8] sm:$0xf]
        %v604 = vld [vmem:[%s4 + $0xc] sm:$0xf]
        %v605 = vld [vmem:[%s4 + $0x10] sm:$0xf]
        %v606 = vld [vmem:[%s4 + $0x14] sm:$0xf]
        %v607 = vld [vmem:[%s4 + $0x18] sm:$0xf]
        %v608 = vld [vmem:[%s4 + $0x1c] sm:$0xf]
        %v609 = vld [vmem:[%s4 + $0x20] sm:$0xf]
        %v610 = vld [vmem:[%s4 + $0x24] sm:$0xf]
        %v611 = vld [vmem:[%s4 + $0x28] sm:$0xf]
        %v612 = vld [vmem:[%s4 + $0x2c] sm:$0xf]
        %v613 = vld [vmem:[%s4 + $0x30] sm:$0xf]
        %v614 = vld [vmem:[%s4 + $0x34] sm:$0xf]
        %v615 = vld [vmem:[%s4 + $0x38] sm:$0xf]
        %v616 = vld [vmem:[%s4 + $0x3c] sm:$0xf]
        %v617 = vld [vmem:[%s5] sm:$0x1]
        %v618 = vpack.c.bf16 %v376, %v375
        %v619 = vpack.c.bf16 %v378, %v377
        %v620 = vpack.c.bf16 %v380, %v379
        %v621 = vpack.c.bf16 %v382, %v381
        %v622 = vpack.c.bf16 %v384, %v383
        %v623 = vpack.c.bf16 %v386, %v385
        %v624 = vpack.c.bf16 %v388, %v387
        %v625 = vpack.c.bf16 %v390, %v389
        %v627 = vperm.slane %v600, 0
        %v645 = vunpack.c.l.b16 %v584
        %v646 = vunpack.c.l.b16 %v585
        %v647 = vunpack.c.l.b16 %v586
        %v648 = vunpack.c.l.b16 %v587
        %v649 = vunpack.c.l.b16 %v588
        %v650 = vunpack.c.l.b16 %v589
        %v651 = vunpack.c.l.b16 %v590
        %v652 = vunpack.c.l.b16 %v591
        %v653 = vunpack.c.l.b16 %v592
        %v654 = vunpack.c.l.b16 %v593
        %v655 = vunpack.c.l.b16 %v594
        %v656 = vunpack.c.l.b16 %v595
        %v657 = vunpack.c.l.b16 %v596
        %v658 = vunpack.c.l.b16 %v597
        %v659 = vunpack.c.l.b16 %v598
        %v660 = vunpack.c.l.b16 %v599
        %v661 = vpack.c.b16 %v646, %v645
        %v662 = vpack.c.b16 %v648, %v647
        %v663 = vpack.c.b16 %v650, %v649
        %v664 = vpack.c.b16 %v652, %v651
        %v665 = vpack.c.b16 %v654, %v653
        %v666 = vpack.c.b16 %v656, %v655
        %v667 = vpack.c.b16 %v658, %v657
        %v668 = vpack.c.b16 %v660, %v659
        %677 = vmatpush.bf16.msra.mxu0 %v668
        %678 = vmatpush.bf16.msra.mxu0 %v667
        %679 = vmatpush.bf16.msra.mxu0 %v666
        %680 = vmatpush.bf16.msra.mxu0 %v665
        %681 = vmatpush.bf16.msra.mxu0 %v664
        %682 = vmatpush.bf16.msra.mxu0 %v663
        %683 = vmatpush.bf16.msra.mxu0 %v662
        %684 = vmatpush.bf16.msra.mxu0 %v661
        %685 = vmatmul.bf16.gmra.mxu0 %v618
        %v686 = vpop.f32.mrf.mxu0
        %v687 = vadd.f32 %v627, %v686
        %v688 = vpop.f32.mrf.mxu0
        %v689 = vadd.f32 %v627, %v688
        %690 = vmatmul.bf16.gmra.mxu0 %v619
        %v691 = vpop.f32.mrf.mxu0
        %v692 = vadd.f32 %v627, %v691
        %v693 = vpop.f32.mrf.mxu0
        %v694 = vadd.f32 %v627, %v693
        %695 = vmatmul.bf16.gmra.mxu0 %v620
        %v696 = vpop.f32.mrf.mxu0
        %v697 = vadd.f32 %v627, %v696
        %v698 = vpop.f32.mrf.mxu0
        %v699 = vadd.f32 %v627, %v698
        %700 = vmatmul.bf16.gmra.mxu0 %v621
        %v701 = vpop.f32.mrf.mxu0
        %v702 = vadd.f32 %v627, %v701
        %v703 = vpop.f32.mrf.mxu0
        %v704 = vadd.f32 %v627, %v703
        %705 = vmatmul.bf16.gmra.mxu0 %v622
        %v706 = vpop.f32.mrf.mxu0
        %v707 = vadd.f32 %v627, %v706
        %v708 = vpop.f32.mrf.mxu0
        %v709 = vadd.f32 %v627, %v708
        %710 = vmatmul.bf16.gmra.mxu0 %v623
        %v711 = vpop.f32.mrf.mxu0
        %v712 = vadd.f32 %v627, %v711
        %v713 = vpop.f32.mrf.mxu0
        %v714 = vadd.f32 %v627, %v713
        %715 = vmatmul.bf16.gmra.mxu0 %v624
        %v716 = vpop.f32.mrf.mxu0
        %v717 = vadd.f32 %v627, %v716
        %v718 = vpop.f32.mrf.mxu0
        %v719 = vadd.f32 %v627, %v718
        %720 = vmatmul.bf16.gmra.mxu0 %v625
        %v721 = vpop.f32.mrf.mxu0
        %v722 = vadd.f32 %v627, %v721
        %v723 = vpop.f32.mrf.mxu0
        %v724 = vadd.f32 %v627, %v723
        %725 = vdwg.mxu0
        %v726 = vmax.f32 %v687, 0.0
        %v727 = vmax.f32 %v689, 0.0
        %v728 = vmax.f32 %v692, 0.0
        %v729 = vmax.f32 %v694, 0.0
        %v730 = vmax.f32 %v697, 0.0
        %v731 = vmax.f32 %v699, 0.0
        %v732 = vmax.f32 %v702, 0.0
        %v733 = vmax.f32 %v704, 0.0
        %v734 = vmax.f32 %v707, 0.0
        %v735 = vmax.f32 %v709, 0.0
        %v736 = vmax.f32 %v712, 0.0
        %v737 = vmax.f32 %v714, 0.0
        %v738 = vmax.f32 %v717, 0.0
        %v739 = vmax.f32 %v719, 0.0
        %v740 = vmax.f32 %v722, 0.0
        %v741 = vmax.f32 %v724, 0.0
        %v742 = vpack.c.bf16 %v727, %v726
        %v743 = vpack.c.bf16 %v729, %v728
        %v744 = vpack.c.bf16 %v731, %v730
        %v745 = vpack.c.bf16 %v733, %v732
        %v746 = vpack.c.bf16 %v735, %v734
        %v747 = vpack.c.bf16 %v737, %v736
        %v748 = vpack.c.bf16 %v739, %v738
        %v749 = vpack.c.bf16 %v741, %v740
        %v751 = vperm.slane %v617, 0
        %v769 = vunpack.c.l.b16 %v601
        %v770 = vunpack.c.l.b16 %v602
        %v771 = vunpack.c.l.b16 %v603
        %v772 = vunpack.c.l.b16 %v604
        %v773 = vunpack.c.l.b16 %v605
        %v774 = vunpack.c.l.b16 %v606
        %v775 = vunpack.c.l.b16 %v607
        %v776 = vunpack.c.l.b16 %v608
        %v777 = vunpack.c.l.b16 %v609
        %v778 = vunpack.c.l.b16 %v610
        %v779 = vunpack.c.l.b16 %v611
        %v780 = vunpack.c.l.b16 %v612
        %v781 = vunpack.c.l.b16 %v613
        %v782 = vunpack.c.l.b16 %v614
        %v783 = vunpack.c.l.b16 %v615
        %v784 = vunpack.c.l.b16 %v616
        %v785 = vpack.c.b16 %v770, %v769
        %v786 = vpack.c.b16 %v772, %v771
        %v787 = vpack.c.b16 %v774, %v773
        %v788 = vpack.c.b16 %v776, %v775
        %v789 = vpack.c.b16 %v778, %v777
        %v790 = vpack.c.b16 %v780, %v779
        %v791 = vpack.c.b16 %v782, %v781
        %v792 = vpack.c.b16 %v784, %v783
        %801 = vmatpush.bf16.msra.mxu0 %v792
        %802 = vmatpush.bf16.msra.mxu0 %v791
        %803 = vmatpush.bf16.msra.mxu0 %v790
        %804 = vmatpush.bf16.msra.mxu0 %v789
        %805 = vmatpush.bf16.msra.mxu0 %v788
        %806 = vmatpush.bf16.msra.mxu0 %v787
        %807 = vmatpush.bf16.msra.mxu0 %v786
        %808 = vmatpush.bf16.msra.mxu0 %v785
        %809 = vmatmul.bf16.gmra.mxu0 %v742
        %v810 = vpop.f32.mrf.mxu0
        %v811 = vadd.f32 %v751, %v810
        %v812 = vpop.f32.mrf.mxu0
        %v813 = vadd.f32 %v751, %v812
        %814 = vmatmul.bf16.gmra.mxu0 %v743
        %v815 = vpop.f32.mrf.mxu0
        %v816 = vadd.f32 %v751, %v815
        %v817 = vpop.f32.mrf.mxu0
        %v818 = vadd.f32 %v751, %v817
        %819 = vmatmul.bf16.gmra.mxu0 %v744
        %v820 = vpop.f32.mrf.mxu0
        %v821 = vadd.f32 %v751, %v820
        %v822 = vpop.f32.mrf.mxu0
        %v823 = vadd.f32 %v751, %v822
        %824 = vmatmul.bf16.gmra.mxu0 %v745
        %v825 = vpop.f32.mrf.mxu0
        %v826 = vadd.f32 %v751, %v825
        %v827 = vpop.f32.mrf.mxu0
        %v828 = vadd.f32 %v751, %v827
        %829 = vmatmul.bf16.gmra.mxu0 %v746
        %v830 = vpop.f32.mrf.mxu0
        %v831 = vadd.f32 %v751, %v830
        %v832 = vpop.f32.mrf.mxu0
        %v833 = vadd.f32 %v751, %v832
        %834 = vmatmul.bf16.gmra.mxu0 %v747
        %v835 = vpop.f32.mrf.mxu0
        %v836 = vadd.f32 %v751, %v835
        %v837 = vpop.f32.mrf.mxu0
        %v838 = vadd.f32 %v751, %v837
        %839 = vmatmul.bf16.gmra.mxu0 %v748
        %v840 = vpop.f32.mrf.mxu0
        %v841 = vadd.f32 %v751, %v840
        %v842 = vpop.f32.mrf.mxu0
        %v843 = vadd.f32 %v751, %v842
        %844 = vmatmul.bf16.gmra.mxu0 %v749
        %v845 = vpop.f32.mrf.mxu0
        %v846 = vadd.f32 %v751, %v845
        %v847 = vpop.f32.mrf.mxu0
        %v848 = vadd.f32 %v751, %v847
        %849 = vdwg.mxu0
        %850 = vst [vmem:[%s345] sm:$0xff] %v811
        %851 = vst [vmem:[%s345 + $0x8] sm:$0xff] %v813
        %852 = vst [vmem:[%s345 + $0x10] sm:$0xff] %v816
        %853 = vst [vmem:[%s345 + $0x18] sm:$0xff] %v818
        %854 = vst [vmem:[%s345 + $0x20] sm:$0xff] %v821
        %855 = vst [vmem:[%s345 + $0x28] sm:$0xff] %v823
        %856 = vst [vmem:[%s345 + $0x30] sm:$0xff] %v826
        %857 = vst [vmem:[%s345 + $0x38] sm:$0xff] %v828
        %858 = vst [vmem:[%s345 + $0x40] sm:$0xff] %v831
        %859 = vst [vmem:[%s345 + $0x48] sm:$0xff] %v833
        %860 = vst [vmem:[%s345 + $0x50] sm:$0xff] %v836
        %861 = vst [vmem:[%s345 + $0x58] sm:$0xff] %v838
        %862 = vst [vmem:[%s345 + $0x60] sm:$0xff] %v841
        %863 = vst [vmem:[%s345 + $0x68] sm:$0xff] %v843
        %864 = vst [vmem:[%s345 + $0x70] sm:$0xff] %v846
        %865 = vst [vmem:[%s345 + $0x78] sm:$0xff] %v848
        %v866 = vpack.c.bf16 %v392, %v391
        %v867 = vpack.c.bf16 %v394, %v393
        %v868 = vpack.c.bf16 %v396, %v395
        %v869 = vpack.c.bf16 %v398, %v397
        %v870 = vpack.c.bf16 %v400, %v399
        %v871 = vpack.c.bf16 %v402, %v401
        %v872 = vpack.c.bf16 %v404, %v403
        %v873 = vpack.c.bf16 %v406, %v405
        %874 = vmatpush.bf16.msra.mxu0 %v668
        %875 = vmatpush.bf16.msra.mxu0 %v667
        %876 = vmatpush.bf16.msra.mxu0 %v666
        %877 = vmatpush.bf16.msra.mxu0 %v665
        %878 = vmatpush.bf16.msra.mxu0 %v664
        %879 = vmatpush.bf16.msra.mxu0 %v663
        %880 = vmatpush.bf16.msra.mxu0 %v662
        %881 = vmatpush.bf16.msra.mxu0 %v661
        %882 = vmatmul.bf16.gmra.mxu0 %v866
        %v883 = vpop.f32.mrf.mxu0
        %v884 = vadd.f32 %v627, %v883
        %v885 = vpop.f32.mrf.mxu0
        %v886 = vadd.f32 %v627, %v885
        %887 = vmatmul.bf16.gmra.mxu0 %v867
        %v888 = vpop.f32.mrf.mxu0
        %v889 = vadd.f32 %v627, %v888
        %v890 = vpop.f32.mrf.mxu0
        %v891 = vadd.f32 %v627, %v890
        %892 = vmatmul.bf16.gmra.mxu0 %v868
        %v893 = vpop.f32.mrf.mxu0
        %v894 = vadd.f32 %v627, %v893
        %v895 = vpop.f32.mrf.mxu0
        %v896 = vadd.f32 %v627, %v895
        %897 = vmatmul.bf16.gmra.mxu0 %v869
        %v898 = vpop.f32.mrf.mxu0
        %v899 = vadd.f32 %v627, %v898
        %v900 = vpop.f32.mrf.mxu0
        %v901 = vadd.f32 %v627, %v900
        %902 = vmatmul.bf16.gmra.mxu0 %v870
        %v903 = vpop.f32.mrf.mxu0
        %v904 = vadd.f32 %v627, %v903
        %v905 = vpop.f32.mrf.mxu0
        %v906 = vadd.f32 %v627, %v905
        %907 = vmatmul.bf16.gmra.mxu0 %v871
        %v908 = vpop.f32.mrf.mxu0
        %v909 = vadd.f32 %v627, %v908
        %v910 = vpop.f32.mrf.mxu0
        %v911 = vadd.f32 %v627, %v910
        %912 = vmatmul.bf16.gmra.mxu0 %v872
        %v913 = vpop.f32.mrf.mxu0
        %v914 = vadd.f32 %v627, %v913
        %v915 = vpop.f32.mrf.mxu0
        %v916 = vadd.f32 %v627, %v915
        %917 = vmatmul.bf16.gmra.mxu0 %v873
        %v918 = vpop.f32.mrf.mxu0
        %v919 = vadd.f32 %v627, %v918
        %v920 = vpop.f32.mrf.mxu0
        %v921 = vadd.f32 %v627, %v920
        %922 = vdwg.mxu0
        %v923 = vmax.f32 %v884, 0.0
        %v924 = vmax.f32 %v886, 0.0
        %v925 = vmax.f32 %v889, 0.0
        %v926 = vmax.f32 %v891, 0.0
        %v927 = vmax.f32 %v894, 0.0
        %v928 = vmax.f32 %v896, 0.0
        %v929 = vmax.f32 %v899, 0.0
        %v930 = vmax.f32 %v901, 0.0
        %v931 = vmax.f32 %v904, 0.0
        %v932 = vmax.f32 %v906, 0.0
        %v933 = vmax.f32 %v909, 0.0
        %v934 = vmax.f32 %v911, 0.0
        %v935 = vmax.f32 %v914, 0.0
        %v936 = vmax.f32 %v916, 0.0
        %v937 = vmax.f32 %v919, 0.0
        %v938 = vmax.f32 %v921, 0.0
        %v939 = vpack.c.bf16 %v924, %v923
        %v940 = vpack.c.bf16 %v926, %v925
        %v941 = vpack.c.bf16 %v928, %v927
        %v942 = vpack.c.bf16 %v930, %v929
        %v943 = vpack.c.bf16 %v932, %v931
        %v944 = vpack.c.bf16 %v934, %v933
        %v945 = vpack.c.bf16 %v936, %v935
        %v946 = vpack.c.bf16 %v938, %v937
        %947 = vmatpush.bf16.msra.mxu0 %v792
        %948 = vmatpush.bf16.msra.mxu0 %v791
        %949 = vmatpush.bf16.msra.mxu0 %v790
        %950 = vmatpush.bf16.msra.mxu0 %v789
        %951 = vmatpush.bf16.msra.mxu0 %v788
        %952 = vmatpush.bf16.msra.mxu0 %v787
        %953 = vmatpush.bf16.msra.mxu0 %v786
        %954 = vmatpush.bf16.msra.mxu0 %v785
        %955 = vmatmul.bf16.gmra.mxu0 %v939
        %v956 = vpop.f32.mrf.mxu0
        %v957 = vadd.f32 %v751, %v956
        %v958 = vpop.f32.mrf.mxu0
        %v959 = vadd.f32 %v751, %v958
        %960 = vmatmul.bf16.gmra.mxu0 %v940
        %v961 = vpop.f32.mrf.mxu0
        %v962 = vadd.f32 %v751, %v961
        %v963 = vpop.f32.mrf.mxu0
        %v964 = vadd.f32 %v751, %v963
        %965 = vmatmul.bf16.gmra.mxu0 %v941
        %v966 = vpop.f32.mrf.mxu0
        %v967 = vadd.f32 %v751, %v966
        %v968 = vpop.f32.mrf.mxu0
        %v969 = vadd.f32 %v751, %v968
        %970 = vmatmul.bf16.gmra.mxu0 %v942
        %v971 = vpop.f32.mrf.mxu0
        %v972 = vadd.f32 %v751, %v971
        %v973 = vpop.f32.mrf.mxu0
        %v974 = vadd.f32 %v751, %v973
        %975 = vmatmul.bf16.gmra.mxu0 %v943
        %v976 = vpop.f32.mrf.mxu0
        %v977 = vadd.f32 %v751, %v976
        %v978 = vpop.f32.mrf.mxu0
        %v979 = vadd.f32 %v751, %v978
        %980 = vmatmul.bf16.gmra.mxu0 %v944
        %v981 = vpop.f32.mrf.mxu0
        %v982 = vadd.f32 %v751, %v981
        %v983 = vpop.f32.mrf.mxu0
        %v984 = vadd.f32 %v751, %v983
        %985 = vmatmul.bf16.gmra.mxu0 %v945
        %v986 = vpop.f32.mrf.mxu0
        %v987 = vadd.f32 %v751, %v986
        %v988 = vpop.f32.mrf.mxu0
        %v989 = vadd.f32 %v751, %v988
        %990 = vmatmul.bf16.gmra.mxu0 %v946
        %v991 = vpop.f32.mrf.mxu0
        %v992 = vadd.f32 %v751, %v991
        %v993 = vpop.f32.mrf.mxu0
        %v994 = vadd.f32 %v751, %v993
        %995 = vdwg.mxu0
        %996 = vst [vmem:[%s352] sm:$0xff] %v957
        %997 = vst [vmem:[%s352 + $0x8] sm:$0xff] %v959
        %998 = vst [vmem:[%s352 + $0x10] sm:$0xff] %v962
        %999 = vst [vmem:[%s352 + $0x18] sm:$0xff] %v964
        %1000 = vst [vmem:[%s352 + $0x20] sm:$0xff] %v967
        %1001 = vst [vmem:[%s352 + $0x28] sm:$0xff] %v969
        %1002 = vst [vmem:[%s352 + $0x30] sm:$0xff] %v972
        %1003 = vst [vmem:[%s352 + $0x38] sm:$0xff] %v974
        %1004 = vst [vmem:[%s352 + $0x40] sm:$0xff] %v977
        %1005 = vst [vmem:[%s352 + $0x48] sm:$0xff] %v979
        %1006 = vst [vmem:[%s352 + $0x50] sm:$0xff] %v982
        %1007 = vst [vmem:[%s352 + $0x58] sm:$0xff] %v984
        %1008 = vst [vmem:[%s352 + $0x60] sm:$0xff] %v987
        %1009 = vst [vmem:[%s352 + $0x68] sm:$0xff] %v989
        %1010 = vst [vmem:[%s352 + $0x70] sm:$0xff] %v992
        %1011 = vst [vmem:[%s352 + $0x78] sm:$0xff] %v994
        %s1012 = sand.u32 %s173, 1
        %s1013 = scalar_lea.sflag [#allocation4], %s1012
        %s1014 = sand.u32 %s173, 1
        %s1015 = smul.addr %s1014, 128
        %s1016 = scalar_lea.vmem [#allocation5], %s1015
        %s1017 = sand.u32 %s199, 1
        %s1018 = scalar_lea.sflag [#allocation7], %s1017
        %s1019 = sand.u32 %s199, 1
        %s1020 = smul.addr %s1019, 128
        %s1021 = scalar_lea.vmem [#allocation6], %s1020
        %s1022 = smul.u32 16, %s29
        %p1023 = scmp.lt.s32.totalorder %s1022, 31
        %s1024 = scalar_select %p1023, %s1022, 31
        %s1025 = smul.addr %s1024, 8
        %s1026 = scalar_lea.vmem %s8, %s1025
        // Predicated region
        $region49: #{simclr_forward_pallas.1} parent=43 // pred_check
          %p1027 = pneg %p183
        $region50: #{simclr_forward_pallas.1} parent=43 // pred_check_branch
          %1029 = sbr.rel (%p1027) target = $region52
        $region51: #{simclr_forward_pallas.1} parent=43 // pred_region
          %s1030 = smul.u32 16, %s29
          %1032 = vsyncadd %s1013, 0
          %s1033 = smul.addr %s1030, 8
          %s1034 = scalar_lea.hbm %s6, %s1033
          %s1035 = sshll.u32 %s1016, 4
          %s1036 = int_to_ptr.vmem [resolvable:$true] %s1035
          %s1037 = sshll.u32 %s1034, 4
          %s1038 = int_to_ptr.hbm [resolvable:$true] %s1037
          %1043 = dma.vmem_to_hbm [thread:$0]  %s1036, 2048, %s1038, %s1013, 128, 128, 8
        $region52: #{simclr_forward_pallas.1} parent=43 // pred_fallthru
          _
        // Predicated region
        $region53: #{simclr_forward_pallas.1} parent=43 // pred_check
          %p1044 = pneg %p209
        $region54: #{simclr_forward_pallas.1} parent=43 // pred_check_branch
          %1046 = sbr.rel (%p1044) target = $region56
        $region55: #{simclr_forward_pallas.1} parent=43 // pred_region
          %s1047 = smul.u32 16, %s29
          %1049 = vsyncadd %s1018, 0
          %s1050 = smul.addr %s1047, 8
          %s1051 = scalar_lea.hbm %s7, %s1050
          %s1052 = sshll.u32 %s1021, 4
          %s1053 = int_to_ptr.vmem [resolvable:$true] %s1052
          %s1054 = sshll.u32 %s1051, 4
          %s1055 = int_to_ptr.hbm [resolvable:$true] %s1054
          %1060 = dma.vmem_to_hbm [thread:$0]  %s1053, 2048, %s1055, %s1018, 128, 128, 8
        $region56: #{simclr_forward_pallas.1} parent=43 // pred_fallthru
          _
        // Predicated region
        $region57: #{simclr_forward_pallas.1} parent=43 // pred_check
          %p1061 = pneg %p235
        $region58: #{simclr_forward_pallas.1} parent=43 // pred_check_branch
          %1063 = sbr.rel (%p1061) target = $region60
        $region59: #{simclr_forward_pallas.1} parent=43 // pred_region
          %s1064 = smul.u32 16, %s29
        $region60: #{simclr_forward_pallas.1} parent=43 // pred_fallthru
          _
      $region44: #{simclr_forward_pallas.1} parent=5 // pred_fallthru
        _
      %p1065 = scmp.le.s32.totalorder 2, %s24
      // Predicated region
      $region61: #{simclr_forward_pallas.1} parent=5 // pred_check
        %p1066 = pneg %p1065
      $region62: #{simclr_forward_pallas.1} parent=5 // pred_check_branch
        %1068 = sbr.rel (%p1066) target = $region64
      $region63: #{simclr_forward_pallas.1} parent=5 // pred_region
        %s1069 = ssub.s32 %s24, 2
        // Predicated region
        $region65: #{simclr_forward_pallas.1} parent=63 // pred_check
          %p1070 = pneg %p189
        $region66: #{simclr_forward_pallas.1} parent=63 // pred_check_branch
          %1072 = sbr.rel (%p1070) target = $region68
        $region67: #{simclr_forward_pallas.1} parent=63 // pred_region
          %s1073 = sand.u32 %s174, 1
          %s1074 = scalar_lea.sflag [#allocation4], %s1073
          %s1075 = sand.u32 %s174, 1
          %s1076 = smul.addr %s1075, 128
          %s1077 = scalar_lea.vmem [#allocation5], %s1076
          %1079 = dma.done %s1074, 2048
        $region68: #{simclr_forward_pallas.1} parent=63 // pred_fallthru
          _
        // Predicated region
        $region69: #{simclr_forward_pallas.1} parent=63 // pred_check
          %p1080 = pneg %p215
        $region70: #{simclr_forward_pallas.1} parent=63 // pred_check_branch
          %1082 = sbr.rel (%p1080) target = $region72
        $region71: #{simclr_forward_pallas.1} parent=63 // pred_region
          %s1083 = sand.u32 %s200, 1
          %s1084 = scalar_lea.sflag [#allocation7], %s1083
          %s1085 = sand.u32 %s200, 1
          %s1086 = smul.addr %s1085, 128
          %s1087 = scalar_lea.vmem [#allocation6], %s1086
          %1089 = dma.done %s1084, 2048
        $region72: #{simclr_forward_pallas.1} parent=63 // pred_fallthru
          _
        // Predicated region
        $region73: #{simclr_forward_pallas.1} parent=63 // pred_check
          %p1090 = pneg %p241
        $region74: #{simclr_forward_pallas.1} parent=63 // pred_check_branch
          %1092 = sbr.rel (%p1090) target = $region76
        $region75: #{simclr_forward_pallas.1} parent=63 // pred_region
          %s1093 = smul.u32 16, %s30
          %p1094 = scmp.lt.s32.totalorder %s1093, 31
          %s1095 = scalar_select %p1094, %s1093, 31
          %s1096 = smul.addr %s1095, 8
          %s1097 = scalar_lea.vmem %s8, %s1096
        $region76: #{simclr_forward_pallas.1} parent=63 // pred_fallthru
          _
      $region64: #{simclr_forward_pallas.1} parent=5 // pred_fallthru
        _
    $region6: #{simclr_forward_pallas.1} parent=1 // loop_footer
      %s28 = sadd.s32 1, %s24
    $region7: #{simclr_forward_pallas.1} parent=1 // loop_footer_branch
      %23 = sbr.rel target = $region3
    $region8: #{simclr_forward_pallas.1} parent=1 // loop_exit
      _
    %1098 = vsyncpa [#allocation3], 1
    %s1099 = scalar_lea.sflag [#allocation3], 1
    %1100 = vsyncpa %s1099, 1
    %1101 = vsyncpa [#allocation4], 1
    %s1102 = scalar_lea.sflag [#allocation4], 1
    %1103 = vsyncpa %s1102, 1
    %1104 = vsyncpa [#allocation7], 1
    %s1105 = scalar_lea.sflag [#allocation7], 1
    %1106 = vsyncpa %s1105, 1

</llo_original>
